<compile_context>
chip_gen: v7x
topology: tpu7x:2x2x1
jax: 0.10.0
libtpu: 0.0.40
codegen_flags: <defaults>
</compile_context>

<pallas_src>
import jax
import jax.numpy as jnp
from jax.experimental import pallas as pl
from jax.experimental.pallas import tpu as pltpu


# ----------------------------- kernels ------------------------------------ #

def _affine_kernel(x_ref, w_ref, o_ref):
    # x_ref: (TM, TL); w_ref: (TM, 1) f32 column broadcast along lanes.
    o_ref[...] = (x_ref[...] * w_ref[...]).astype(o_ref.dtype)


def _affine_bias_kernel(x_ref, wb_ref, o_ref):
    # x_ref: (TM, TL); wb_ref: (TM, 2) f32 -> col 0 = weight, col 1 = bias.
    wb = wb_ref[...]
    w = wb[:, 0:1]
    b = wb[:, 1:2]
    o_ref[...] = (x_ref[...] * w + b).astype(o_ref.dtype)


# ------------------------------ wrapper ------------------------------------ #

_LANE_TILE_CAP = 2048            # multiple of 128, lane-dense
_ROW_TILE_TARGET_BYTES = 2 << 20  # ~2 MiB per x tile: safe on v5e/v6e/v7x


def _pick_tiles(rows, hw, itemsize):
    """Pick (TM, TL) honoring the (8,128) rule and a ~2 MiB/x-tile budget."""
    # Lane (last) dim: full extent if small, else a multiple of 128.
    tl = hw if hw <= _LANE_TILE_CAP else _LANE_TILE_CAP
    # Sublane (row) dim: target ~2 MiB per tile, multiple of 8, or full extent.
    target_rows = max(8, _ROW_TILE_TARGET_BYTES // max(1, tl * itemsize))
    target_rows = (target_rows // 8) * 8
    tm = rows if rows <= target_rows else target_rows
    return tm, tl


def affine_layer(x_nchw, weight, bias=None):
    """out = x * weight (+ bias); weight/bias shaped (1, C, 1, 1), x NCHW."""
    n, c, h, w = x_nchw.shape
    rows, hw = n * c, h * w

    # Free contiguous view: NCHW -> (N*C, H*W).  No transposes.
    x2d = x_nchw.reshape(rows, hw)

    # Tiny per-row parameter column(s), kept in float32 (PyTorch param dtype).
    w_col = jnp.broadcast_to(
        weight.reshape(1, c).astype(jnp.float32), (n, c)).reshape(rows, 1)
    if bias is not None:
        b_col = jnp.broadcast_to(
            bias.reshape(1, c).astype(jnp.float32), (n, c)).reshape(rows, 1)
        params = jnp.concatenate([w_col, b_col], axis=1)  # (rows, 2)
        kernel = _affine_bias_kernel
        pcols = 2
    else:
        params = w_col                                    # (rows, 1)
        kernel = _affine_kernel
        pcols = 1

    tm, tl = _pick_tiles(rows, hw, x2d.dtype.itemsize)
    grid = (pl.cdiv(rows, tm), pl.cdiv(hw, tl))  # masked tails handled by Pallas

    x_spec = pl.BlockSpec((tm, tl), lambda i, j: (i, j))
    p_spec = pl.BlockSpec((tm, pcols), lambda i, j: (i, 0))
    o_spec = pl.BlockSpec((tm, tl), lambda i, j: (i, j))

    out2d = pl.pallas_call(
        kernel,
        out_shape=jax.ShapeDtypeStruct((rows, hw), x2d.dtype),
        grid_spec=pltpu.PrefetchScalarGridSpec(
            num_scalar_prefetch=0,
            grid=grid,
            in_specs=[x_spec, p_spec],
            out_specs=o_spec,
        ),
        compiler_params=pltpu.CompilerParams(
            # Both axes independent -> shards across the 2 TCs on v7x, no-op
            # on v5e/v6e.  ~8 MiB double-buffered footprint fits everywhere;
            # 32 MiB limit is within scoped/physical VMEM on all generations.
            dimension_semantics=("parallel", "parallel"),
            vmem_limit_bytes=32 * 1024 * 1024,
        ),
    )(x2d, params)

    # Free view back to NCHW.
    return out2d.reshape(n, c, h, w)


# ------------------------------- test -------------------------------------- #

if __name__ == "__main__":
    key = jax.random.PRNGKey(0)
    N, C, H, W = 2, 4, 16, 16
    x = jax.random.normal(key, (N, C, H, W), dtype=jnp.float32)

    # AffineLayer.__init__ semantics: weight=1, bias=0; perturb deterministically
    # so the per-channel broadcast is actually exercised.
    weight = jnp.ones((1, C, 1, 1), dtype=jnp.float32)
    bias = jnp.zeros((1, C, 1, 1), dtype=jnp.float32)
    weight = weight + 0.5 * jnp.arange(C, dtype=jnp.float32).reshape(1, C, 1, 1)
    bias = bias + 0.25 * jnp.arange(C, dtype=jnp.float32).reshape(1, C, 1, 1)

    # bias=False path (module default).
    out_nobias = jax.block_until_ready(affine_layer(x, weight, None))
    ref_nobias = x * weight
    assert out_nobias.shape == x.shape and out_nobias.dtype == x.dtype
    assert jnp.allclose(out_nobias, ref_nobias, atol=1e-6), "no-bias mismatch"

    # bias=True path.
    out_bias = jax.block_until_ready(affine_layer(x, weight, bias))
    ref_bias = x * weight + bias
    assert jnp.allclose(out_bias, ref_bias, atol=1e-6), "bias mismatch"

    # Odd, non-aligned shape: exercises the full-extent (non-(8,128)) block path.
    key2 = jax.random.PRNGKey(0)
    x_odd = jax.random.normal(key2, (2, 3, 5, 7), dtype=jnp.float32)
    w_odd = 1.0 + 0.5 * jnp.arange(3, dtype=jnp.float32).reshape(1, 3, 1, 1)
    b_odd = 0.25 * jnp.arange(3, dtype=jnp.float32).reshape(1, 3, 1, 1)
    out_odd = jax.block_until_ready(affine_layer(x_odd, w_odd, b_odd))
    assert jnp.allclose(out_odd, x_odd * w_odd + b_odd, atol=1e-6), "odd-shape mismatch"

    print("KERNEL_OK")
</pallas_src>

<mosaic_0001>
module attributes {stable_mosaic.version = 11 : i64} {
  func.func @_affine_kernel(%arg0: i32, %arg1: i32, %arg2: memref<8x256xf32, #tpu.memory_space<vmem>>, %arg3: memref<8x1xf32, #tpu.memory_space<vmem>>, %arg4: memref<8x256xf32, #tpu.memory_space<vmem>>) attributes {dimension_semantics = [#tpu.dimension_semantics<parallel>, #tpu.dimension_semantics<parallel>], iteration_bounds = array<i64: 1, 1>, scalar_prefetch = 0 : i64, scratch_operands = 0 : i64, tpu.core_type = #tpu.core_type<tc>, window_params = [{transform_indices = @transform_0, window_bounds = array<i64: 8, 256>}, {transform_indices = @transform_1, window_bounds = array<i64: 8, 1>}, {transform_indices = @transform_2, window_bounds = array<i64: 8, 256>}]} {
    %c0 = arith.constant 0 : index
    %c0_0 = arith.constant 0 : index
    %0 = vector.load %arg2[%c0, %c0_0] : memref<8x256xf32, #tpu.memory_space<vmem>>, vector<8x256xf32>
    %c0_1 = arith.constant 0 : index
    %c0_2 = arith.constant 0 : index
    %1 = vector.load %arg3[%c0_1, %c0_2] : memref<8x1xf32, #tpu.memory_space<vmem>>, vector<8x1xf32>
    %2 = vector.broadcast %1 : vector<8x1xf32> to vector<8x256xf32>
    %3 = arith.mulf %0, %2 : vector<8x256xf32>
    %c0_3 = arith.constant 0 : index
    %c0_4 = arith.constant 0 : index
    %4 = vector.load %arg4[%c0_3, %c0_4] : memref<8x256xf32, #tpu.memory_space<vmem>>, vector<8x256xf32>
    tpu.vector_store %arg4[%c0_3, %c0_4], %3 {strides = array<i32>} : memref<8x256xf32, #tpu.memory_space<vmem>>, vector<8x256xf32>,
    return
  }
  func.func @transform_0(%arg0: i32, %arg1: i32) -> (i32, i32) {
    %c0_i32 = arith.constant 0 : i32
    return %arg0, %arg1 : i32, i32
  }
  func.func @transform_1(%arg0: i32, %arg1: i32) -> (i32, i32) {
    %c0_i32 = arith.constant 0 : i32
    %c0_i32_0 = arith.constant 0 : i32
    return %arg0, %c0_i32 : i32, i32
  }
  func.func @transform_2(%arg0: i32, %arg1: i32) -> (i32, i32) {
    %c0_i32 = arith.constant 0 : i32
    return %arg0, %arg1 : i32, i32
  }
}

</mosaic_0001>

<llo_original>
// kernel: tpu_custom_call.1
$region0: #{tpu_custom_call.1}
  #allocation0 [shape = 'u32[]', space=smem, size = 0x4, offset = 0x4, fixed_abs, tag = 'smem constant byte address 0x4 - core index']
  #allocation1 [shape = 'u32[144,128]{1,0:T(1,128)}', space=vmem, size = 0x12000, scoped, tag = 'internal scratch']
  %s0 = inlined_call_operand.hbm [shape: f32[8,256], index: 0, kind: input, shape index: {}]
  %s1 = inlined_call_operand.vmem [shape: f32[8,1], index: 1, kind: input, shape index: {}]
  %s2 = inlined_call_operand.hbm [shape: f32[8,256], index: 2, kind: output, shape index: {}]
  %s3 = sld [smem:[#allocation0]]
  $region22: #{tpu_custom_call.1} parent=0
    _
  %s5 = ssub.s32 1, %s3
  %s6 = scalar_select 0, %s5, %s3
  $region1: #{tpu_custom_call.1} parent=0
    #allocation2 [shape = 'u8[8192]{0}', space=vmem, size = 0x2000, scoped, tag = 'input window, operand 0, single buffered']
    #allocation3 [shape = 's32[1]{0}', space=sflag, size = 0x4, scoped, tag = 'scoped memory for tpu_custom_call.1']
    #allocation4 [shape = 's32[1]{0}', space=sflag, size = 0x4, scoped, tag = 'scoped memory for tpu_custom_call.1']
    #allocation5 [shape = 'u8[8192]{0}', space=vmem, size = 0x2000, scoped, tag = 'output window, operand 0, single buffered']
    %7 = vsyncpa [#allocation3], 0
    %8 = vsyncpa [#allocation4], 0
    // Predicated region
    $region2: #{tpu_custom_call.1} parent=1 // pred_check
      _
    $region3: #{tpu_custom_call.1} parent=1 // pred_check_branch
      %10 = sbr.rel (0) target = $region5
    $region4: #{tpu_custom_call.1} parent=1 // pred_region
      %s12 = ssub.s32 256, 256
      %13 = vsyncadd [#allocation3], %s12
      %s15 = sshll.u32 [#allocation2], 4
      %s16 = int_to_ptr.vmem [resolvable:$true] %s15
      %18 = dma.hbm_to_vmem [thread:$0]  %s0, 256, %s16, [#allocation3]
    $region5: #{tpu_custom_call.1} parent=1 // pred_fallthru
      _
    // Predicated region
    $region6: #{tpu_custom_call.1} parent=1 // pred_check
      _
    $region7: #{tpu_custom_call.1} parent=1 // pred_check_branch
      %20 = sbr.rel (0) target = $region9
    $region8: #{tpu_custom_call.1} parent=1 // pred_region
      _
    $region9: #{tpu_custom_call.1} parent=1 // pred_fallthru
      _
    // Predicated region
    $region10: #{tpu_custom_call.1} parent=1 // pred_check
      _
    $region11: #{tpu_custom_call.1} parent=1 // pred_check_branch
      %22 = sbr.rel (0) target = $region13
    $region12: #{tpu_custom_call.1} parent=1 // pred_region
      %23 = dma.done [#allocation3], 256
    $region13: #{tpu_custom_call.1} parent=1 // pred_fallthru
      _
    %v24 = vld [vmem:[#allocation2] sm:$0xff]
    %v25 = vld [vmem:[#allocation2 + $0x8] sm:$0xff]
    %v26 = vld [vmem:[%s1] sm:$0xff]
    %28 = vset.pattern.permute.xlu0 0
    %29 = vperm.xlu0 %28, %v26
    %v30 = vpop.permute.xlu0 %29
    %v32 = vmul.f32 %v24, %v30
    %v33 = vmul.f32 %v25, %v30
    %34 = vst [vmem:[#allocation5] sm:$0xff] %v32
    %35 = vst [vmem:[#allocation5 + $0x8] sm:$0xff] %v33
    // Predicated region
    $region14: #{tpu_custom_call.1} parent=1 // pred_check
      _
    $region15: #{tpu_custom_call.1} parent=1 // pred_check_branch
      %37 = sbr.rel (0) target = $region17
    $region16: #{tpu_custom_call.1} parent=1 // pred_region
      %s39 = ssub.s32 256, 256
      %40 = vsyncadd [#allocation4], %s39
      %s42 = sshll.u32 [#allocation5], 4
      %s43 = int_to_ptr.vmem [resolvable:$true] %s42
      %45 = dma.vmem_to_hbm [thread:$0]  %s43, 256, %s2, [#allocation4]
    $region17: #{tpu_custom_call.1} parent=1 // pred_fallthru
      _
    // Predicated region
    $region18: #{tpu_custom_call.1} parent=1 // pred_check
      _
    $region19: #{tpu_custom_call.1} parent=1 // pred_check_branch
      %47 = sbr.rel (0) target = $region21
    $region20: #{tpu_custom_call.1} parent=1 // pred_region
      %48 = dma.done [#allocation4], 256
    $region21: #{tpu_custom_call.1} parent=1 // pred_fallthru
      _
    %49 = vsyncpa [#allocation3], 1
    %50 = vsyncpa [#allocation4], 1

</llo_original>
